<compile_context>
chip_gen: v5e
topology: v5e:2x2
jax: 0.10.0
libtpu: 0.0.40
codegen_flags: <defaults>
</compile_context>

<pallas_src>
import functools
import math

import jax
import jax.numpy as jnp
from jax.experimental import pallas as pl
from jax.experimental.pallas import tpu as pltpu

# Per-block tile sizing (bytes of *padded* data per buffer).
_TILE_TARGET_BYTES = 2 << 20   # ~2 MiB per block: HBM-roofline sweet spot
_TILE_CAP_BYTES = 3 << 20      # hard cap per block (4 buffers -> <= 12 MiB VMEM)


def _l1norm_kernel(x_ref, o_ref, *, scale, eps):
    # x_ref / o_ref: (TB, c, TN) tiles.  The reduction runs over the tiny
    # channel (sublane) axis; TN is lane-dense on the 128-wide lane axis.
    x = x_ref[...]
    # Channel sum accumulated in f32 (cheap sublane reduce).
    s = jnp.sum(x, axis=1, keepdims=True, dtype=jnp.float32)        # (TB, 1, TN)
    # rsqrt on the EUP; fold `scale` into the small (TB, 1, TN) vector so the
    # full-tile path is a single broadcast multiply in the input dtype.
    inv = jax.lax.rsqrt(jnp.maximum(s, eps)) * scale                 # (TB, 1, TN)
    o_ref[...] = (x * inv.astype(x.dtype)).astype(o_ref.dtype)


def _sublane_multiple(itemsize):
    # f32 -> 8 sublanes per vreg, bf16 -> 16, int8/fp8 -> 32.
    return 8 * max(1, 4 // int(itemsize))


def _largest_divisor_leq(n, cap):
    """Largest divisor of n that is <= cap (n >= 1)."""
    cap = min(n, max(1, cap))
    best = 1
    i = 1
    while i * i <= n:
        if n % i == 0:
            lo, hi = i, n // i
            if lo <= cap and lo > best:
                best = lo
            if hi <= cap and hi > best:
                best = hi
        i += 1
    return best


def _choose_tiles(b, c, hw, itemsize):
    """Pick (TB, TN, padded_c) targeting ~1-4 MiB of sublane-padded data/block."""
    m = _sublane_multiple(itemsize)
    padded_c = -(-c // m) * m                  # channel axis pads up to a vreg row group
    bytes_per_lane = padded_c * itemsize       # per batch row, per lane column

    if hw % 128 == 0:
        # Largest divisor of hw that is a multiple of 128 and fits the cap.
        cap_lane_blocks = max(1, _TILE_CAP_BYTES // (bytes_per_lane * 128))
        tn = 128 * _largest_divisor_leq(hw // 128, cap_lane_blocks)
    else:
        # Non-128-aligned spatial extent: a full-extent block is still legal
        # (block dim == array dim); only used when it fits the cap (wrapper checks).
        tn = hw

    tile_bytes = bytes_per_lane * tn
    tb = 1
    if tile_bytes < _TILE_TARGET_BYTES and b > 1:
        # Small feature maps: pack several batch rows per grid step so the
        # ~0.35 us per-step overhead is amortized across the batch.
        tb = _largest_divisor_leq(b, max(1, _TILE_TARGET_BYTES // tile_bytes))
    return tb, tn, padded_c


def _reference(x, scale, dim=1, eps=1e-12):
    # Pure-JAX transcription of the PyTorch forward (keepdim broadcast).
    s = jnp.sum(x, axis=dim, keepdims=True)
    return scale * x * jax.lax.rsqrt(jnp.maximum(s, eps))


def l1normalization(x, scale, dim=1, eps=1e-12, use_pallas=None):
    """scale * x * rsqrt(clamp(x.sum(dim=1), 1e-12)), broadcast over dim=1."""
    assert dim == 1, "kernel implements the module default dim=1"
    b, c = x.shape[0], x.shape[1]
    spatial = x.shape[2:]
    hw = int(math.prod(spatial)) if spatial else 1
    itemsize = jnp.dtype(x.dtype).itemsize

    tb, tn, padded_c = _choose_tiles(b, c, hw, itemsize)
    tile_bytes = tb * padded_c * tn * itemsize
    total_bytes = b * c * hw * itemsize

    # Pallas is only well-formed / worthwhile when tiles divide the problem
    # and fit VMEM (the full-extent fallback for hw % 128 != 0 can be too big).
    pallas_ok = (b % tb == 0) and (hw % tn == 0) and (tile_bytes <= _TILE_CAP_BYTES)
    if use_pallas is None:
        # Tiny problems / lane-masked stores (hw < 128): a fused XLA
        # elementwise op beats a pallas_call launch.
        use_pallas = pallas_ok and total_bytes >= (256 << 10) and hw >= 128
    if not (use_pallas and pallas_ok):
        return _reference(x, scale, dim=dim, eps=eps)

    # Free reshape: (b, c, *spatial) -> (b, c, hw); channels on sublanes,
    # spatial (lane-dense) on lanes.  No transposes anywhere.
    x2 = x.reshape(b, c, hw)
    grid = (b // tb, hw // tn)

    cost = pl.CostEstimate(
        flops=3 * b * c * hw,            # channel sum + broadcast multiply
        transcendentals=b * hw,          # rsqrt per spatial position
        bytes_accessed=2 * b * c * hw * itemsize,
    )

    out = pl.pallas_call(
        functools.partial(_l1norm_kernel, scale=float(scale), eps=float(eps)),
        out_shape=jax.ShapeDtypeStruct((b, c, hw), x.dtype),
        grid=grid,
        in_specs=[pl.BlockSpec((tb, c, tn), lambda i, j: (i, 0, j))],
        out_specs=pl.BlockSpec((tb, c, tn), lambda i, j: (i, 0, j)),
        compiler_params=pltpu.CompilerParams(
            dimension_semantics=("parallel", "parallel")),
        cost_estimate=cost,
    )(x2)

    return out.reshape(x.shape)


if __name__ == "__main__":
    scale = 0.5  # module hyper-parameter (from __init__)

    # Primary test: module-sized input, forced through the Pallas kernel.
    b, c, h, w = 2, 4, 16, 16
    x = jax.random.normal(jax.random.PRNGKey(0), (b, c, h, w), dtype=jnp.float32)
    out = jax.block_until_ready(l1normalization(x, scale, use_pallas=True))
    ref = _reference(x, scale)
    assert out.shape == x.shape, out.shape
    assert jnp.allclose(out, ref, atol=1e-4, rtol=1e-4), "mismatch vs reference"

    # Secondary test: larger spatial extent exercises the divisor-based lane
    # tiling + batch blocking (auto dispatch selects the Pallas path here).
    x2 = jax.random.normal(jax.random.PRNGKey(1), (2, 4, 96, 128), dtype=jnp.float32)
    out2 = jax.block_until_ready(l1normalization(x2, scale))
    ref2 = _reference(x2, scale)
    assert jnp.allclose(out2, ref2, atol=1e-4, rtol=1e-4), "mismatch vs reference (2)"

    print("KERNEL_OK")
</pallas_src>

<mosaic_0001>
module attributes {stable_mosaic.version = 11 : i64} {
  func.func @_l1norm_kernel(%arg0: i32, %arg1: i32, %arg2: memref<2x4x256xf32, #tpu.memory_space<vmem>>, %arg3: memref<2x4x256xf32, #tpu.memory_space<vmem>>) attributes {dimension_semantics = [#tpu.dimension_semantics<parallel>, #tpu.dimension_semantics<parallel>], iteration_bounds = array<i64: 1, 1>, scalar_prefetch = 0 : i64, scratch_operands = 0 : i64, tpu.core_type = #tpu.core_type<tc>, window_params = [{transform_indices = @transform_0, window_bounds = array<i64: 2, 4, 256>}, {transform_indices = @transform_1, window_bounds = array<i64: 2, 4, 256>}]} {
    %c0 = arith.constant 0 : index
    %c0_0 = arith.constant 0 : index
    %c0_1 = arith.constant 0 : index
    %0 = vector.load %arg2[%c0, %c0_0, %c0_1] : memref<2x4x256xf32, #tpu.memory_space<vmem>>, vector<2x4x256xf32>
    %cst = arith.constant dense<0.000000e+00> : vector<2x256xf32>
    %1 = vector.multi_reduction <add>, %0, %cst [1] : vector<2x4x256xf32> to vector<2x256xf32>
    %2 = vector.shape_cast %1 : vector<2x256xf32> to vector<2x1x256xf32>
    %cst_2 = arith.constant 9.99999996E-13 : f32
    %3 = vector.broadcast %cst_2 : f32 to vector<2x1x256xf32>
    %4 = arith.maximumf %2, %3 : vector<2x1x256xf32>
    %5 = math.rsqrt %4 : vector<2x1x256xf32>
    %cst_3 = arith.constant 5.000000e-01 : f32
    %6 = vector.broadcast %cst_3 : f32 to vector<2x1x256xf32>
    %7 = arith.mulf %5, %6 : vector<2x1x256xf32>
    %8 = vector.broadcast %7 : vector<2x1x256xf32> to vector<2x4x256xf32>
    %9 = arith.mulf %0, %8 : vector<2x4x256xf32>
    %c0_4 = arith.constant 0 : index
    %c0_5 = arith.constant 0 : index
    %c0_6 = arith.constant 0 : index
    %10 = vector.load %arg3[%c0_4, %c0_5, %c0_6] : memref<2x4x256xf32, #tpu.memory_space<vmem>>, vector<2x4x256xf32>
    tpu.vector_store %arg3[%c0_4, %c0_5, %c0_6], %9 {strides = array<i32>} : memref<2x4x256xf32, #tpu.memory_space<vmem>>, vector<2x4x256xf32>,
    return
  }
  func.func @transform_0(%arg0: i32, %arg1: i32) -> (i32, i32, i32) {
    %c0_i32 = arith.constant 0 : i32
    %c0_i32_0 = arith.constant 0 : i32
    return %arg0, %c0_i32, %arg1 : i32, i32, i32
  }
  func.func @transform_1(%arg0: i32, %arg1: i32) -> (i32, i32, i32) {
    %c0_i32 = arith.constant 0 : i32
    %c0_i32_0 = arith.constant 0 : i32
    return %arg0, %c0_i32, %arg1 : i32, i32, i32
  }
}

</mosaic_0001>

<llo_original>
// kernel: tpu_custom_call.1
$region0: #{tpu_custom_call.1}
  #allocation0 [shape = 'u32[]', space=smem, size = 0x4, offset = 0x4, fixed_abs, tag = 'smem constant byte address 0x4 - core index']
  #allocation1 [shape = 'u32[72,128]{1,0:T(1,128)}', space=vmem, size = 0x9000, scoped, tag = 'internal scratch']
  %s0 = inlined_call_operand.hbm [shape: f32[2,4,256], index: 0, kind: input, shape index: {}]
  %s1 = inlined_call_operand.hbm [shape: f32[2,4,256], index: 1, kind: output, shape index: {}]
  %s2 = sld [smem:[#allocation0]]
  $region18: #{tpu_custom_call.1} parent=0
    _
  %s4 = ssub.s32 1, %s2
  %s5 = scalar_select 0, %s4, %s2
  $region1: #{tpu_custom_call.1} parent=0
    #allocation2 [shape = 'u8[8192]{0}', space=vmem, size = 0x2000, scoped, tag = 'input window, operand 0, single buffered']
    #allocation3 [shape = 's32[1]{0}', space=sflag, size = 0x4, scoped, tag = 'scoped memory for tpu_custom_call.1']
    #allocation4 [shape = 's32[1]{0}', space=sflag, size = 0x4, scoped, tag = 'scoped memory for tpu_custom_call.1']
    #allocation5 [shape = 'u8[8192]{0}', space=vmem, size = 0x2000, scoped, tag = 'output window, operand 0, single buffered']
    %6 = vsyncpa [#allocation3], 0
    %7 = vsyncpa [#allocation4], 0
    // Predicated region
    $region2: #{tpu_custom_call.1} parent=1 // pred_check
      _
    $region3: #{tpu_custom_call.1} parent=1 // pred_check_branch
      %9 = sbr.rel (0) target = $region5
    $region4: #{tpu_custom_call.1} parent=1 // pred_region
      %11 = vsyncadd [#allocation3], 0
      %s12 = sshll.u32 %s0, 4
      %s13 = int_to_ptr.hbm [resolvable:$true] %s12
      %s14 = sshll.u32 [#allocation2], 4
      %s15 = int_to_ptr.vmem [resolvable:$true] %s14
      %20 = dma.hbm_to_vmem [thread:$0]  %s13, 256, %s15, [#allocation3], 128, 128, 8
    $region5: #{tpu_custom_call.1} parent=1 // pred_fallthru
      _
    // Predicated region
    $region6: #{tpu_custom_call.1} parent=1 // pred_check
      _
    $region7: #{tpu_custom_call.1} parent=1 // pred_check_branch
      %22 = sbr.rel (0) target = $region9
    $region8: #{tpu_custom_call.1} parent=1 // pred_region
      %24 = dma.done [#allocation3], 256
    $region9: #{tpu_custom_call.1} parent=1 // pred_fallthru
      _
    %v25 = vld [vmem:[#allocation2] sm:$0xff]
    %v26 = vld [vmem:[#allocation2 + $0x8] sm:$0xff]
    %29 = vst [vmem:[#allocation1] ss:$2 sm:$0xff] %v25
    %v30 = vld.sshfl [vmem:[#allocation1] sm:$0xff pattern:$0x75316420]
    %v31 = vld.sshfl [vmem:[#allocation1 + $0x8] sm:$0xff pattern:$0x75316420]
    %s32 = scalar_lea.vmem [#allocation1], 16
    %33 = vst [vmem:[%s32] ss:$2 sm:$0xff] %v26
    %v34 = vld.sshfl [vmem:[#allocation1 + $0x10] sm:$0xff pattern:$0x75316420]
    %v35 = vld.sshfl [vmem:[#allocation1 + $0x18] sm:$0xff pattern:$0x75316420]
    %vm40 = vcmask 1043456
    %v41 = vsel %vm40, %v30, 0.0
    %v42 = vrot.slane %v41, 4
    %v43 = vadd.f32 %v41, %v42
    %v44 = vrot.slane %v43, 2
    %v45 = vadd.f32 %v43, %v44
    %v46 = vrot.slane %v45, 1
    %v47 = vadd.f32 %v45, %v46
    %v48 = vsel %vm40, %v31, 0.0
    %v49 = vrot.slane %v48, 4
    %v50 = vadd.f32 %v48, %v49
    %v51 = vrot.slane %v50, 2
    %v52 = vadd.f32 %v50, %v51
    %v53 = vrot.slane %v52, 1
    %v54 = vadd.f32 %v52, %v53
    %v55 = vsel %vm40, %v34, 0.0
    %v56 = vrot.slane %v55, 4
    %v57 = vadd.f32 %v55, %v56
    %v58 = vrot.slane %v57, 2
    %v59 = vadd.f32 %v57, %v58
    %v60 = vrot.slane %v59, 1
    %v61 = vadd.f32 %v59, %v60
    %v62 = vsel %vm40, %v35, 0.0
    %v63 = vrot.slane %v62, 4
    %v64 = vadd.f32 %v62, %v63
    %v65 = vrot.slane %v64, 2
    %v66 = vadd.f32 %v64, %v65
    %v67 = vrot.slane %v66, 1
    %v68 = vadd.f32 %v66, %v67
    %v69 = vmax.f32 %v47, 1e-12
    %v70 = vmax.f32 %v54, 1e-12
    %v71 = vmax.f32 %v61, 1e-12
    %v72 = vmax.f32 %v68, 1e-12
    %v73 = vrsqrt.pop %v69
    %v74 = vmul.f32 %v73, %v69
    %v75 = vmul.f32 %v74, %v73
    %v76 = vmul.f32 0.5, %v75
    %v77 = vsub.f32 1.5, %v76
    %v78 = vmul.f32 %v73, %v77
    %vm79 = vweird.f32 %v69
    %vm80 = vweird.f32 %v73
    %vm81 = vmor %vm79, %vm80
    %v82 = vsel %vm81, %v73, %v78
    %v83 = vrsqrt.pop %v70
    %v84 = vmul.f32 %v83, %v70
    %v85 = vmul.f32 %v84, %v83
    %v86 = vmul.f32 0.5, %v85
    %v87 = vsub.f32 1.5, %v86
    %v88 = vmul.f32 %v83, %v87
    %vm89 = vweird.f32 %v70
    %vm90 = vweird.f32 %v83
    %vm91 = vmor %vm89, %vm90
    %v92 = vsel %vm91, %v83, %v88
    %v93 = vrsqrt.pop %v71
    %v94 = vmul.f32 %v93, %v71
    %v95 = vmul.f32 %v94, %v93
    %v96 = vmul.f32 0.5, %v95
    %v97 = vsub.f32 1.5, %v96
    %v98 = vmul.f32 %v93, %v97
    %vm99 = vweird.f32 %v71
    %vm100 = vweird.f32 %v93
    %vm101 = vmor %vm99, %vm100
    %v102 = vsel %vm101, %v93, %v98
    %v103 = vrsqrt.pop %v72
    %v104 = vmul.f32 %v103, %v72
    %v105 = vmul.f32 %v104, %v103
    %v106 = vmul.f32 0.5, %v105
    %v107 = vsub.f32 1.5, %v106
    %v108 = vmul.f32 %v103, %v107
    %vm109 = vweird.f32 %v72
    %vm110 = vweird.f32 %v103
    %vm111 = vmor %vm109, %vm110
    %v112 = vsel %vm111, %v103, %v108
    %v113 = vmul.f32 %v82, 0.5
    %v114 = vmul.f32 %v92, 0.5
    %v115 = vmul.f32 %v102, 0.5
    %v116 = vmul.f32 %v112, 0.5
    %v121 = vrot.slane %v114, 4
    %v122 = vrot.slane %v116, 4
    %v123 = vsel %vm40, %v113, %v121
    %v124 = vsel %vm40, %v115, %v122
    %v127 = vmul.f32 %v25, %v123
    %v128 = vmul.f32 %v26, %v124
    %129 = vst [vmem:[#allocation5] sm:$0xff] %v127
    %130 = vst [vmem:[#allocation5 + $0x8] sm:$0xff] %v128
    // Predicated region
    $region10: #{tpu_custom_call.1} parent=1 // pred_check
      _
    $region11: #{tpu_custom_call.1} parent=1 // pred_check_branch
      %132 = sbr.rel (0) target = $region13
    $region12: #{tpu_custom_call.1} parent=1 // pred_region
      %134 = vsyncadd [#allocation4], 0
      %s135 = sshll.u32 [#allocation5], 4
      %s136 = int_to_ptr.vmem [resolvable:$true] %s135
      %s137 = sshll.u32 %s1, 4
      %s138 = int_to_ptr.hbm [resolvable:$true] %s137
      %143 = dma.vmem_to_hbm [thread:$0]  %s136, 256, %s138, [#allocation4], 128, 128, 8
    $region13: #{tpu_custom_call.1} parent=1 // pred_fallthru
      _
    // Predicated region
    $region14: #{tpu_custom_call.1} parent=1 // pred_check
      _
    $region15: #{tpu_custom_call.1} parent=1 // pred_check_branch
      %145 = sbr.rel (0) target = $region17
    $region16: #{tpu_custom_call.1} parent=1 // pred_region
      %147 = dma.done [#allocation4], 256
    $region17: #{tpu_custom_call.1} parent=1 // pred_fallthru
      _
    %148 = vsyncpa [#allocation3], 1
    %149 = vsyncpa [#allocation4], 1

</llo_original>
